<compile_context>
chip_gen: v6e
topology: v6e:2x2x1
jax: 0.10.0
libtpu: 0.0.40
codegen_flags: <defaults>
</compile_context>

<pallas_src>
import functools

import jax
import jax.numpy as jnp
from jax.experimental import pallas as pl
from jax.experimental.pallas import tpu as pltpu

PROCESSING_STEPS = 3
_NEG = -1e30  # f32 mask sentinel (softmax stats stay in f32)


def _round_up(v, m):
    return (v + m - 1) // m * m


def _make_set2set_kernel(D, out_w, n_tiles, steps):
    def kernel(x_ref, batch_ref, wih_ref, whh_ref, b_ref, out_ref,
               h_sc, c_sc, m_sc, l_sc, r_sc):
        s = pl.program_id(0)          # processing step (arbitrary / sequential)
        t = pl.program_id(1)          # node tile       (arbitrary / sequential)
        last_t = n_tiles - 1
        last_s = steps - 1

        # ---------------- one-time init ----------------
        @pl.when((s == 0) & (t == 0))
        def _init():
            h_sc[...] = jnp.zeros_like(h_sc)
            c_sc[...] = jnp.zeros_like(c_sc)
            r_sc[...] = jnp.zeros_like(r_sc)
            out_ref[...] = jnp.zeros_like(out_ref)

        # ---------------- per-step LSTM + accumulator reset (tile 0) ----------------
        @pl.when(t == 0)
        def _lstm_and_reset():
            # q_star from previous step = [q_prev (= h), r_prev]; zeros at step 0.
            q_star = jnp.concatenate([h_sc[...], r_sc[...]], axis=-1)        # (Bp, 2D)
            gates = (jnp.dot(q_star, wih_ref[...],
                             preferred_element_type=jnp.float32)
                     + jnp.dot(h_sc[...], whh_ref[...],
                               preferred_element_type=jnp.float32)
                     + b_ref[...])                                            # (Bp, 4D)
            i_g = jax.nn.sigmoid(gates[:, 0 * D:1 * D])
            f_g = jax.nn.sigmoid(gates[:, 1 * D:2 * D])
            g_g = jnp.tanh(gates[:, 2 * D:3 * D])
            o_g = jax.nn.sigmoid(gates[:, 3 * D:4 * D])
            c_new = f_g * c_sc[...] + i_g * g_g
            h_new = o_g * jnp.tanh(c_new)                                     # == q
            c_sc[...] = c_new
            h_sc[...] = h_new
            # reset online-softmax accumulators for this processing step
            m_sc[...] = jnp.full_like(m_sc, _NEG)
            l_sc[...] = jnp.zeros_like(l_sc)
            r_sc[...] = jnp.zeros_like(r_sc)

        # ---------------- attention over this node tile (online segment softmax) ----
        x_tile = x_ref[...]                         # (T, D)  bf16
        batch_row = batch_ref[...]                  # (1, T)  int32 (-1 on pad rows)
        q = h_sc[...]                               # (Bp, D) f32

        # S[g, n] = <q_g, x_n>  on the MXU (bf16 in, f32 accumulate)
        S = jax.lax.dot_general(
            q.astype(jnp.bfloat16), x_tile,
            dimension_numbers=(((1,), (1,)), ((), ())),
            preferred_element_type=jnp.float32)     # (Bp, T)

        graph_ids = jax.lax.broadcasted_iota(jnp.int32, S.shape, 0)           # (Bp, T)
        mask = graph_ids == batch_row                                         # (Bp, T)

        s_masked = jnp.where(mask, S, _NEG)
        tile_max = jnp.max(s_masked, axis=1, keepdims=True)                   # (Bp, 1)
        m_new = jnp.maximum(m_sc[...], tile_max)
        alpha = jnp.exp(m_sc[...] - m_new)                                    # (Bp, 1)
        # exact zeros off-segment (also neutralizes padded rows / graphs)
        p = jnp.where(mask, jnp.exp(S - m_new), 0.0)                          # (Bp, T)
        l_sc[...] = alpha * l_sc[...] + jnp.sum(p, axis=1, keepdims=True)
        r_sc[...] = alpha * r_sc[...] + jnp.dot(
            p.astype(jnp.bfloat16), x_tile, preferred_element_type=jnp.float32)
        m_sc[...] = m_new

        # ---------------- finalize this processing step (last tile) ----------------
        @pl.when(t == last_t)
        def _finalize_step():
            l_safe = jnp.maximum(l_sc[...], 1e-30)            # empty-graph guard
            r_sc[...] = r_sc[...] * pl.reciprocal(l_safe, approx=True)

        @pl.when((t == last_t) & (s == last_s))
        def _write_out():
            q_star = jnp.concatenate([h_sc[...], r_sc[...]], axis=-1)         # (Bp, 2D)
            pad = out_w - 2 * D
            if pad > 0:   # lane-dense 128-wide output slab
                q_star = jnp.concatenate(
                    [q_star, jnp.zeros((q_star.shape[0], pad), jnp.float32)],
                    axis=-1)
            out_ref[...] = q_star

    return kernel


@functools.partial(jax.jit, static_argnames=("num_graphs", "processing_steps"))
def set2set_forward(x, batch, w_ih, w_hh, b_ih, b_hh, *, num_graphs,
                    processing_steps=PROCESSING_STEPS):
    """x: (N, D) node features, batch: (N,) int32 graph ids -> (num_graphs, 2*D)."""
    N, D = x.shape
    B = int(num_graphs)
    B_pad = _round_up(max(B, 1), 8)
    out_w = _round_up(2 * D, 128)

    # Node tiling: a single (8-aligned) tile for small N, else 512-row tiles
    # (multiple of 128 so the (1, T) batch-id block stays legal).
    if N <= 512:
        tile_n = _round_up(N, 8)
        n_pad = tile_n
    else:
        tile_n = 512
        n_pad = _round_up(N, tile_n)
    n_tiles = n_pad // tile_n

    # Padded inputs: pad rows get graph id -1 -> never match any graph.
    x_p = jnp.zeros((n_pad, D), jnp.bfloat16).at[:N].set(x.astype(jnp.bfloat16))
    batch_p = jnp.full((1, n_pad), -1, jnp.int32).at[0, :N].set(
        batch.astype(jnp.int32))

    wih_t = w_ih.T.astype(jnp.float32)                 # (2D, 4D)
    whh_t = w_hh.T.astype(jnp.float32)                 # (D, 4D)
    bias = (b_ih + b_hh)[None, :].astype(jnp.float32)  # (1, 4D)

    kernel = _make_set2set_kernel(D, out_w, n_tiles, processing_steps)

    # VMEM budget: x tile (bf16, double-buffered) + batch tile + resident
    # weights + resident output block + scratch + (Bp, T) intermediates.
    vmem_bytes = (
        2 * tile_n * D * 2
        + 2 * 8 * tile_n * 4
        + (2 * D + D + 1) * 4 * D * 4
        + B_pad * out_w * 4
        + B_pad * (3 * D + 2) * 4
        + 4 * B_pad * tile_n * 4
    )
    vmem_bytes = int(min(max(2 * vmem_bytes, 16 << 20), 48 << 20))

    out = pl.pallas_call(
        kernel,
        out_shape=jax.ShapeDtypeStruct((B_pad, out_w), jnp.float32),
        grid_spec=pltpu.PrefetchScalarGridSpec(
            num_scalar_prefetch=0,
            grid=(processing_steps, n_tiles),
            in_specs=[
                pl.BlockSpec((tile_n, D), lambda s, t: (t, 0)),     # x (bf16)
                pl.BlockSpec((1, tile_n), lambda s, t: (0, t)),     # graph ids
                pl.BlockSpec((2 * D, 4 * D), lambda s, t: (0, 0)),  # W_ih^T (resident)
                pl.BlockSpec((D, 4 * D), lambda s, t: (0, 0)),      # W_hh^T (resident)
                pl.BlockSpec((1, 4 * D), lambda s, t: (0, 0)),      # bias   (resident)
            ],
            out_specs=pl.BlockSpec((B_pad, out_w), lambda s, t: (0, 0)),
            scratch_shapes=[
                pltpu.VMEM((B_pad, D), jnp.float32),   # h (= q)
                pltpu.VMEM((B_pad, D), jnp.float32),   # c
                pltpu.VMEM((B_pad, 1), jnp.float32),   # running max m
                pltpu.VMEM((B_pad, 1), jnp.float32),   # running denom l
                pltpu.VMEM((B_pad, D), jnp.float32),   # running weighted sum r
            ],
        ),
        # Both axes carry sequential dependencies (LSTM recurrence, online
        # softmax accumulation) -> "arbitrary".  A v7x megacore split would
        # need a cross-core reduction; not worth it at these sizes.
        compiler_params=pltpu.CompilerParams(
            dimension_semantics=("arbitrary", "arbitrary"),
            vmem_limit_bytes=vmem_bytes,
        ),
    )(x_p, batch_p, wih_t, whh_t, bias)

    return out[:B, :2 * D]


if __name__ == "__main__":
    key = jax.random.PRNGKey(0)
    k_x, k_wih, k_whh, k_bih, k_bhh = jax.random.split(key, 5)

    # args.node_size = D
    D = 32            # node feature dim (hidden size of the internal LSTM)
    N = 16            # total number of nodes across all graphs
    B = 2             # number of graphs in the batch

    x = jax.random.normal(k_x, (N, D), dtype=jnp.float32)
    batch = jnp.concatenate([
        jnp.zeros((N // 2,), dtype=jnp.int32),
        jnp.ones((N - N // 2,), dtype=jnp.int32),
    ])

    # LSTM(input_size=2D, hidden_size=D) params: uniform(-1/sqrt(D), 1/sqrt(D)),
    # matching torch.nn.LSTM default init (deterministic via PRNGKey(0) splits).
    bound = 1.0 / jnp.sqrt(jnp.float32(D))
    w_ih = jax.random.uniform(k_wih, (4 * D, 2 * D), jnp.float32, -bound, bound)
    w_hh = jax.random.uniform(k_whh, (4 * D, D), jnp.float32, -bound, bound)
    b_ih = jax.random.uniform(k_bih, (4 * D,), jnp.float32, -bound, bound)
    b_hh = jax.random.uniform(k_bhh, (4 * D,), jnp.float32, -bound, bound)

    out = set2set_forward(x, batch, w_ih, w_hh, b_ih, b_hh, num_graphs=B)
    out = jax.block_until_ready(out)
    assert out.shape == (B, 2 * D), out.shape
    assert bool(jnp.all(jnp.isfinite(out)))
    print("KERNEL_OK")
</pallas_src>

<mosaic_0001>
module attributes {stable_mosaic.version = 11 : i64} {
  func.func @kernel(%arg0: i32, %arg1: i32, %arg2: memref<16x32xbf16, #tpu.memory_space<vmem>>, %arg3: memref<1x16xi32, #tpu.memory_space<vmem>>, %arg4: memref<64x128xf32, #tpu.memory_space<vmem>>, %arg5: memref<32x128xf32, #tpu.memory_space<vmem>>, %arg6: memref<1x128xf32, #tpu.memory_space<vmem>>, %arg7: memref<8x128xf32, #tpu.memory_space<vmem>>, %arg8: memref<8x32xf32, #tpu.memory_space<vmem>>, %arg9: memref<8x32xf32, #tpu.memory_space<vmem>>, %arg10: memref<8x1xf32, #tpu.memory_space<vmem>>, %arg11: memref<8x1xf32, #tpu.memory_space<vmem>>, %arg12: memref<8x32xf32, #tpu.memory_space<vmem>>) attributes {dimension_semantics = [#tpu.dimension_semantics<arbitrary>, #tpu.dimension_semantics<arbitrary>], iteration_bounds = array<i64: 3, 1>, scalar_prefetch = 0 : i64, scratch_operands = 5 : i64, tpu.core_type = #tpu.core_type<tc>, window_params = [{transform_indices = @transform_0, window_bounds = array<i64: 16, 32>}, {transform_indices = @transform_1, window_bounds = array<i64: 1, 16>}, {pipeline_mode = #tpu.pipeline_mode<synchronous>, transform_indices = @transform_2, window_bounds = array<i64: 64, 128>}, {pipeline_mode = #tpu.pipeline_mode<synchronous>, transform_indices = @transform_3, window_bounds = array<i64: 32, 128>}, {pipeline_mode = #tpu.pipeline_mode<synchronous>, transform_indices = @transform_4, window_bounds = array<i64: 1, 128>}, {pipeline_mode = #tpu.pipeline_mode<synchronous>, transform_indices = @transform_5, window_bounds = array<i64: 8, 128>}]} {
    %c0_i32 = arith.constant 0 : i32
    %0 = arith.cmpi eq, %arg0, %c0_i32 : i32
    %c0_i32_0 = arith.constant 0 : i32
    %1 = arith.cmpi eq, %arg1, %c0_i32_0 : i32
    %2 = arith.andi %0, %1 : i1
    %3 = arith.extui %2 : i1 to i32
    %c0_i32_1 = arith.constant 0 : i32
    %4 = arith.cmpi ne, %3, %c0_i32_1 : i32
    scf.if %4 {
      %cst_32 = arith.constant 0.000000e+00 : f32
      %52 = vector.broadcast %cst_32 : f32 to vector<8x32xf32>
      %c0_33 = arith.constant 0 : index
      %c0_34 = arith.constant 0 : index
      %53 = vector.load %arg8[%c0_33, %c0_34] : memref<8x32xf32, #tpu.memory_space<vmem>>, vector<8x32xf32>
      tpu.vector_store %arg8[%c0_33, %c0_34], %52 {strides = array<i32>} : memref<8x32xf32, #tpu.memory_space<vmem>>, vector<8x32xf32>,
      %cst_35 = arith.constant 0.000000e+00 : f32
      %54 = vector.broadcast %cst_35 : f32 to vector<8x32xf32>
      %c0_36 = arith.constant 0 : index
      %c0_37 = arith.constant 0 : index
      %55 = vector.load %arg9[%c0_36, %c0_37] : memref<8x32xf32, #tpu.memory_space<vmem>>, vector<8x32xf32>
      tpu.vector_store %arg9[%c0_36, %c0_37], %54 {strides = array<i32>} : memref<8x32xf32, #tpu.memory_space<vmem>>, vector<8x32xf32>,
      %cst_38 = arith.constant 0.000000e+00 : f32
      %56 = vector.broadcast %cst_38 : f32 to vector<8x32xf32>
      %c0_39 = arith.constant 0 : index
      %c0_40 = arith.constant 0 : index
      %57 = vector.load %arg12[%c0_39, %c0_40] : memref<8x32xf32, #tpu.memory_space<vmem>>, vector<8x32xf32>
      tpu.vector_store %arg12[%c0_39, %c0_40], %56 {strides = array<i32>} : memref<8x32xf32, #tpu.memory_space<vmem>>, vector<8x32xf32>,
      %cst_41 = arith.constant 0.000000e+00 : f32
      %58 = vector.broadcast %cst_41 : f32 to vector<8x128xf32>
      %c0_42 = arith.constant 0 : index
      %c0_43 = arith.constant 0 : index
      %59 = vector.load %arg7[%c0_42, %c0_43] : memref<8x128xf32, #tpu.memory_space<vmem>>, vector<8x128xf32>
      tpu.vector_store %arg7[%c0_42, %c0_43], %58 {strides = array<i32>} : memref<8x128xf32, #tpu.memory_space<vmem>>, vector<8x128xf32>,
    } else {
    }
    %c0_i32_2 = arith.constant 0 : i32
    %5 = arith.cmpi eq, %arg1, %c0_i32_2 : i32
    %6 = arith.extui %5 : i1 to i32
    %c0_i32_3 = arith.constant 0 : i32
    %7 = arith.cmpi ne, %6, %c0_i32_3 : i32
    scf.if %7 {
      %c0_32 = arith.constant 0 : index
      %c0_33 = arith.constant 0 : index
      %52 = vector.load %arg8[%c0_32, %c0_33] : memref<8x32xf32, #tpu.memory_space<vmem>>, vector<8x32xf32>
      %c0_34 = arith.constant 0 : index
      %c0_35 = arith.constant 0 : index
      %53 = vector.load %arg12[%c0_34, %c0_35] : memref<8x32xf32, #tpu.memory_space<vmem>>, vector<8x32xf32>
      %54 = tpu.concatenate %52, %53 in 1 : vector<8x32xf32>, vector<8x32xf32> -> vector<8x64xf32>
      %c0_36 = arith.constant 0 : index
      %c0_37 = arith.constant 0 : index
      %55 = vector.load %arg4[%c0_36, %c0_37] : memref<64x128xf32, #tpu.memory_space<vmem>>, vector<64x128xf32>
      %cst_38 = arith.constant dense<0.000000e+00> : vector<8x128xf32>
      %56 = tpu.matmul %54, %55, %cst_38 {dimension_numbers = #tpu.dot_dimension_numbers<[1], [0], [0], [1], [0, 0, 1, 1], [], []>} : vector<8x64xf32>, vector<64x128xf32>, vector<8x128xf32> -> vector<8x128xf32>
      %c0_39 = arith.constant 0 : index
      %c0_40 = arith.constant 0 : index
      %57 = vector.load %arg8[%c0_39, %c0_40] : memref<8x32xf32, #tpu.memory_space<vmem>>, vector<8x32xf32>
      %c0_41 = arith.constant 0 : index
      %c0_42 = arith.constant 0 : index
      %58 = vector.load %arg5[%c0_41, %c0_42] : memref<32x128xf32, #tpu.memory_space<vmem>>, vector<32x128xf32>
      %cst_43 = arith.constant dense<0.000000e+00> : vector<8x128xf32>
      %59 = tpu.matmul %57, %58, %cst_43 {dimension_numbers = #tpu.dot_dimension_numbers<[1], [0], [0], [1], [0, 0, 1, 1], [], []>} : vector<8x32xf32>, vector<32x128xf32>, vector<8x128xf32> -> vector<8x128xf32>
      %60 = arith.addf %56, %59 : vector<8x128xf32>
      %c0_44 = arith.constant 0 : index
      %c0_45 = arith.constant 0 : index
      %61 = vector.load %arg6[%c0_44, %c0_45] : memref<1x128xf32, #tpu.memory_space<vmem>>, vector<1x128xf32>
      %62 = vector.broadcast %61 : vector<1x128xf32> to vector<8x128xf32>
      %63 = arith.addf %60, %62 : vector<8x128xf32>
      %64 = vector.extract_strided_slice %63 {offsets = [0, 0], sizes = [8, 32], strides = [1, 1]} : vector<8x128xf32> to vector<8x32xf32>
      %65 = arith.negf %64 : vector<8x32xf32>
      %66 = math.exp %65 : vector<8x32xf32>
      %cst_46 = arith.constant 1.000000e+00 : f32
      %67 = vector.broadcast %cst_46 : f32 to vector<8x32xf32>
      %68 = arith.addf %67, %66 : vector<8x32xf32>
      %69 = arith.divf %67, %68 : vector<8x32xf32>
      %70 = vector.extract_strided_slice %63 {offsets = [0, 32], sizes = [8, 32], strides = [1, 1]} : vector<8x128xf32> to vector<8x32xf32>
      %71 = arith.negf %70 : vector<8x32xf32>
      %72 = math.exp %71 : vector<8x32xf32>
      %cst_47 = arith.constant 1.000000e+00 : f32
      %73 = vector.broadcast %cst_47 : f32 to vector<8x32xf32>
      %74 = arith.addf %73, %72 : vector<8x32xf32>
      %75 = arith.divf %73, %74 : vector<8x32xf32>
      %76 = vector.extract_strided_slice %63 {offsets = [0, 64], sizes = [8, 32], strides = [1, 1]} : vector<8x128xf32> to vector<8x32xf32>
      %77 = math.tanh %76 : vector<8x32xf32>
      %78 = vector.extract_strided_slice %63 {offsets = [0, 96], sizes = [8, 32], strides = [1, 1]} : vector<8x128xf32> to vector<8x32xf32>
      %79 = arith.negf %78 : vector<8x32xf32>
      %80 = math.exp %79 : vector<8x32xf32>
      %cst_48 = arith.constant 1.000000e+00 : f32
      %81 = vector.broadcast %cst_48 : f32 to vector<8x32xf32>
      %82 = arith.addf %81, %80 : vector<8x32xf32>
      %83 = arith.divf %81, %82 : vector<8x32xf32>
      %c0_49 = arith.constant 0 : index
      %c0_50 = arith.constant 0 : index
      %84 = vector.load %arg9[%c0_49, %c0_50] : memref<8x32xf32, #tpu.memory_space<vmem>>, vector<8x32xf32>
      %85 = arith.mulf %75, %84 : vector<8x32xf32>
      %86 = arith.mulf %69, %77 : vector<8x32xf32>
      %87 = arith.addf %85, %86 : vector<8x32xf32>
      %88 = math.tanh %87 : vector<8x32xf32>
      %89 = arith.mulf %83, %88 : vector<8x32xf32>
      %c0_51 = arith.constant 0 : index
      %c0_52 = arith.constant 0 : index
      %90 = vector.load %arg9[%c0_51, %c0_52] : memref<8x32xf32, #tpu.memory_space<vmem>>, vector<8x32xf32>
      tpu.vector_store %arg9[%c0_51, %c0_52], %87 {strides = array<i32>} : memref<8x32xf32, #tpu.memory_space<vmem>>, vector<8x32xf32>,
      %c0_53 = arith.constant 0 : index
      %c0_54 = arith.constant 0 : index
      %91 = vector.load %arg8[%c0_53, %c0_54] : memref<8x32xf32, #tpu.memory_space<vmem>>, vector<8x32xf32>
      tpu.vector_store %arg8[%c0_53, %c0_54], %89 {strides = array<i32>} : memref<8x32xf32, #tpu.memory_space<vmem>>, vector<8x32xf32>,
      %cst_55 = arith.constant -1.000000e+30 : f32
      %92 = vector.broadcast %cst_55 : f32 to vector<8x1xf32>
      %c0_56 = arith.constant 0 : index
      %c0_57 = arith.constant 0 : index
      %93 = vector.load %arg10[%c0_56, %c0_57] : memref<8x1xf32, #tpu.memory_space<vmem>>, vector<8x1xf32>
      tpu.vector_store %arg10[%c0_56, %c0_57], %92 {strides = array<i32>} : memref<8x1xf32, #tpu.memory_space<vmem>>, vector<8x1xf32>,
      %cst_58 = arith.constant 0.000000e+00 : f32
      %94 = vector.broadcast %cst_58 : f32 to vector<8x1xf32>
      %c0_59 = arith.constant 0 : index
      %c0_60 = arith.constant 0 : index
      %95 = vector.load %arg11[%c0_59, %c0_60] : memref<8x1xf32, #tpu.memory_space<vmem>>, vector<8x1xf32>
      tpu.vector_store %arg11[%c0_59, %c0_60], %94 {strides = array<i32>} : memref<8x1xf32, #tpu.memory_space<vmem>>, vector<8x1xf32>,
      %cst_61 = arith.constant 0.000000e+00 : f32
      %96 = vector.broadcast %cst_61 : f32 to vector<8x32xf32>
      %c0_62 = arith.constant 0 : index
      %c0_63 = arith.constant 0 : index
      %97 = vector.load %arg12[%c0_62, %c0_63] : memref<8x32xf32, #tpu.memory_space<vmem>>, vector<8x32xf32>
      tpu.vector_store %arg12[%c0_62, %c0_63], %96 {strides = array<i32>} : memref<8x32xf32, #tpu.memory_space<vmem>>, vector<8x32xf32>,
    } else {
    }
    %c0 = arith.constant 0 : index
    %c0_4 = arith.constant 0 : index
    %8 = vector.load %arg2[%c0, %c0_4] : memref<16x32xbf16, #tpu.memory_space<vmem>>, vector<16x32xbf16>
    %c0_5 = arith.constant 0 : index
    %c0_6 = arith.constant 0 : index
    %9 = vector.load %arg3[%c0_5, %c0_6] : memref<1x16xi32, #tpu.memory_space<vmem>>, vector<1x16xi32>
    %c0_7 = arith.constant 0 : index
    %c0_8 = arith.constant 0 : index
    %10 = vector.load %arg8[%c0_7, %c0_8] : memref<8x32xf32, #tpu.memory_space<vmem>>, vector<8x32xf32>
    %11 = arith.truncf %10 : vector<8x32xf32> to vector<8x32xbf16>
    %cst = arith.constant dense<0.000000e+00> : vector<8x16xf32>
    %12 = tpu.matmul %11, %8, %cst {dimension_numbers = #tpu.dot_dimension_numbers<[1], [1], [0], [0], [0, 0, 1, 0], [], []>} : vector<8x32xbf16>, vector<16x32xbf16>, vector<8x16xf32> -> vector<8x16xf32>
    %13 = tpu.iota {dimensions = array<i32: 0>} : vector<8x16xi32>
    %14 = vector.broadcast %9 : vector<1x16xi32> to vector<8x16xi32>
    %15 = arith.cmpi eq, %13, %14 : vector<8x16xi32>
    %cst_9 = arith.constant -1.000000e+30 : f32
    %16 = vector.broadcast %cst_9 : f32 to vector<8x16xf32>
    %17 = arith.select %15, %12, %16 : vector<8x16xi1>, vector<8x16xf32>
    %cst_10 = arith.constant dense<0xFF800000> : vector<8xf32>
    %18 = vector.multi_reduction <maximumf>, %17, %cst_10 [1] : vector<8x16xf32> to vector<8xf32>
    %19 = vector.shape_cast %18 : vector<8xf32> to vector<8x1xf32>
    %c0_11 = arith.constant 0 : index
    %c0_12 = arith.constant 0 : index
    %20 = vector.load %arg10[%c0_11, %c0_12] : memref<8x1xf32, #tpu.memory_space<vmem>>, vector<8x1xf32>
    %21 = arith.maximumf %20, %19 : vector<8x1xf32>
    %c0_13 = arith.constant 0 : index
    %c0_14 = arith.constant 0 : index
    %22 = vector.load %arg10[%c0_13, %c0_14] : memref<8x1xf32, #tpu.memory_space<vmem>>, vector<8x1xf32>
    %23 = arith.subf %22, %21 : vector<8x1xf32>
    %24 = math.exp %23 : vector<8x1xf32>
    %25 = vector.broadcast %21 : vector<8x1xf32> to vector<8x16xf32>
    %26 = arith.subf %12, %25 : vector<8x16xf32>
    %27 = math.exp %26 : vector<8x16xf32>
    %cst_15 = arith.constant 0.000000e+00 : f32
    %28 = vector.broadcast %cst_15 : f32 to vector<8x16xf32>
    %29 = arith.select %15, %27, %28 : vector<8x16xi1>, vector<8x16xf32>
    %c0_16 = arith.constant 0 : index
    %c0_17 = arith.constant 0 : index
    %30 = vector.load %arg11[%c0_16, %c0_17] : memref<8x1xf32, #tpu.memory_space<vmem>>, vector<8x1xf32>
    %31 = arith.mulf %24, %30 : vector<8x1xf32>
    %cst_18 = arith.constant dense<0.000000e+00> : vector<8xf32>
    %32 = vector.multi_reduction <add>, %29, %cst_18 [1] : vector<8x16xf32> to vector<8xf32>
    %33 = vector.shape_cast %32 : vector<8xf32> to vector<8x1xf32>
    %34 = arith.addf %31, %33 : vector<8x1xf32>
    %c0_19 = arith.constant 0 : index
    %c0_20 = arith.constant 0 : index
    %35 = vector.load %arg11[%c0_19, %c0_20] : memref<8x1xf32, #tpu.memory_space<vmem>>, vector<8x1xf32>
    tpu.vector_store %arg11[%c0_19, %c0_20], %34 {strides = array<i32>} : memref<8x1xf32, #tpu.memory_space<vmem>>, vector<8x1xf32>,
    %c0_21 = arith.constant 0 : index
    %c0_22 = arith.constant 0 : index
    %36 = vector.load %arg12[%c0_21, %c0_22] : memref<8x32xf32, #tpu.memory_space<vmem>>, vector<8x32xf32>
    %37 = vector.broadcast %24 : vector<8x1xf32> to vector<8x32xf32>
    %38 = arith.mulf %37, %36 : vector<8x32xf32>
    %39 = arith.truncf %29 : vector<8x16xf32> to vector<8x16xbf16>
    %cst_23 = arith.constant dense<0.000000e+00> : vector<8x32xf32>
    %40 = tpu.matmul %39, %8, %cst_23 {dimension_numbers = #tpu.dot_dimension_numbers<[1], [0], [0], [1], [0, 0, 1, 1], [], []>} : vector<8x16xbf16>, vector<16x32xbf16>, vector<8x32xf32> -> vector<8x32xf32>
    %41 = arith.addf %38, %40 : vector<8x32xf32>
    %c0_24 = arith.constant 0 : index
    %c0_25 = arith.constant 0 : index
    %42 = vector.load %arg12[%c0_24, %c0_25] : memref<8x32xf32, #tpu.memory_space<vmem>>, vector<8x32xf32>
    tpu.vector_store %arg12[%c0_24, %c0_25], %41 {strides = array<i32>} : memref<8x32xf32, #tpu.memory_space<vmem>>, vector<8x32xf32>,
    %c0_26 = arith.constant 0 : index
    %c0_27 = arith.constant 0 : index
    %43 = vector.load %arg10[%c0_26, %c0_27] : memref<8x1xf32, #tpu.memory_space<vmem>>, vector<8x1xf32>
    tpu.vector_store %arg10[%c0_26, %c0_27], %21 {strides = array<i32>} : memref<8x1xf32, #tpu.memory_space<vmem>>, vector<8x1xf32>,
    %c0_i32_28 = arith.constant 0 : i32
    %44 = arith.cmpi eq, %arg1, %c0_i32_28 : i32
    %45 = arith.extui %44 : i1 to i32
    %c0_i32_29 = arith.constant 0 : i32
    %46 = arith.cmpi ne, %45, %c0_i32_29 : i32
    scf.if %46 {
      %c0_32 = arith.constant 0 : index
      %c0_33 = arith.constant 0 : index
      %52 = vector.load %arg11[%c0_32, %c0_33] : memref<8x1xf32, #tpu.memory_space<vmem>>, vector<8x1xf32>
      %cst_34 = arith.constant 1.000000e-30 : f32
      %53 = vector.broadcast %cst_34 : f32 to vector<8x1xf32>
      %54 = arith.maximumf %52, %53 : vector<8x1xf32>
      %c0_35 = arith.constant 0 : index
      %c0_36 = arith.constant 0 : index
      %55 = vector.load %arg12[%c0_35, %c0_36] : memref<8x32xf32, #tpu.memory_space<vmem>>, vector<8x32xf32>
      %56 = tpu.reciprocal %54 {approx = true} : vector<8x1xf32> -> vector<8x1xf32>
      %57 = vector.broadcast %56 : vector<8x1xf32> to vector<8x32xf32>
      %58 = arith.mulf %55, %57 : vector<8x32xf32>
      %c0_37 = arith.constant 0 : index
      %c0_38 = arith.constant 0 : index
      %59 = vector.load %arg12[%c0_37, %c0_38] : memref<8x32xf32, #tpu.memory_space<vmem>>, vector<8x32xf32>
      tpu.vector_store %arg12[%c0_37, %c0_38], %58 {strides = array<i32>} : memref<8x32xf32, #tpu.memory_space<vmem>>, vector<8x32xf32>,
    } else {
    }
    %c0_i32_30 = arith.constant 0 : i32
    %47 = arith.cmpi eq, %arg1, %c0_i32_30 : i32
    %c2_i32 = arith.constant 2 : i32
    %48 = arith.cmpi eq, %arg0, %c2_i32 : i32
    %49 = arith.andi %47, %48 : i1
    %50 = arith.extui %49 : i1 to i32
    %c0_i32_31 = arith.constant 0 : i32
    %51 = arith.cmpi ne, %50, %c0_i32_31 : i32
    scf.if %51 {
      %c0_32 = arith.constant 0 : index
      %c0_33 = arith.constant 0 : index
      %52 = vector.load %arg8[%c0_32, %c0_33] : memref<8x32xf32, #tpu.memory_space<vmem>>, vector<8x32xf32>
      %c0_34 = arith.constant 0 : index
      %c0_35 = arith.constant 0 : index
      %53 = vector.load %arg12[%c0_34, %c0_35] : memref<8x32xf32, #tpu.memory_space<vmem>>, vector<8x32xf32>
      %54 = tpu.concatenate %52, %53 in 1 : vector<8x32xf32>, vector<8x32xf32> -> vector<8x64xf32>
      %cst_36 = arith.constant 0.000000e+00 : f32
      %55 = vector.broadcast %cst_36 : f32 to vector<8x64xf32>
      %56 = tpu.concatenate %54, %55 in 1 : vector<8x64xf32>, vector<8x64xf32> -> vector<8x128xf32>
      %c0_37 = arith.constant 0 : index
      %c0_38 = arith.constant 0 : index
      %57 = vector.load %arg7[%c0_37, %c0_38] : memref<8x128xf32, #tpu.memory_space<vmem>>, vector<8x128xf32>
      tpu.vector_store %arg7[%c0_37, %c0_38], %56 {strides = array<i32>} : memref<8x128xf32, #tpu.memory_space<vmem>>, vector<8x128xf32>,
    } else {
    }
    return
  }
  func.func @transform_0(%arg0: i32, %arg1: i32) -> (i32, i32) {
    %c0_i32 = arith.constant 0 : i32
    %c0_i32_0 = arith.constant 0 : i32
    return %arg1, %c0_i32 : i32, i32
  }
  func.func @transform_1(%arg0: i32, %arg1: i32) -> (i32, i32) {
    %c0_i32 = arith.constant 0 : i32
    %c0_i32_0 = arith.constant 0 : i32
    return %c0_i32, %arg1 : i32, i32
  }
  func.func @transform_2(%arg0: i32, %arg1: i32) -> (i32, i32) {
    %c0_i32 = arith.constant 0 : i32
    %c0_i32_0 = arith.constant 0 : i32
    %c0_i32_1 = arith.constant 0 : i32
    return %c0_i32, %c0_i32_0 : i32, i32
  }
  func.func @transform_3(%arg0: i32, %arg1: i32) -> (i32, i32) {
    %c0_i32 = arith.constant 0 : i32
    %c0_i32_0 = arith.constant 0 : i32
    %c0_i32_1 = arith.constant 0 : i32
    return %c0_i32, %c0_i32_0 : i32, i32
  }
  func.func @transform_4(%arg0: i32, %arg1: i32) -> (i32, i32) {
    %c0_i32 = arith.constant 0 : i32
    %c0_i32_0 = arith.constant 0 : i32
    %c0_i32_1 = arith.constant 0 : i32
    return %c0_i32, %c0_i32_0 : i32, i32
  }
  func.func @transform_5(%arg0: i32, %arg1: i32) -> (i32, i32) {
    %c0_i32 = arith.constant 0 : i32
    %c0_i32_0 = arith.constant 0 : i32
    %c0_i32_1 = arith.constant 0 : i32
    return %c0_i32, %c0_i32_0 : i32, i32
  }
}

</mosaic_0001>

<llo_original>
// kernel: set2set_forward.1
$region0: #{set2set_forward.1}
  #allocation0 [shape = 'u32[]', space=smem, size = 0x4, offset = 0x4, fixed_abs, tag = 'smem constant byte address 0x4 - core index']
  #allocation1 [shape = 'u32[144,128]{1,0:T(1,128)}', space=vmem, size = 0x12000, scoped, tag = 'internal scratch']
  #allocation2 [shape = 'f32[8,32]{1,0:T(8,128)}', space=vmem, size = 0x1000, scoped, tag = 'scratch operand']
  #allocation3 [shape = 'f32[8,32]{1,0:T(8,128)}', space=vmem, size = 0x1000, scoped, tag = 'scratch operand']
  #allocation4 [shape = 'f32[8,1]{1,0:T(8,128)}', space=vmem, size = 0x1000, scoped, tag = 'scratch operand']
  #allocation5 [shape = 'f32[8,1]{1,0:T(8,128)}', space=vmem, size = 0x1000, scoped, tag = 'scratch operand']
  #allocation6 [shape = 'f32[8,32]{1,0:T(8,128)}', space=vmem, size = 0x1000, scoped, tag = 'scratch operand']
  %s0 = inlined_call_operand.vmem [shape: bf16[16,32], index: 0, kind: input, shape index: {}]
  %s1 = inlined_call_operand.vmem [shape: s32[1,16], index: 1, kind: input, shape index: {}]
  %s2 = inlined_call_operand.hbm [shape: f32[64,128], index: 2, kind: input, shape index: {}]
  %s3 = inlined_call_operand.vmem [shape: f32[32,128], index: 3, kind: input, shape index: {}]
  %s4 = inlined_call_operand.vmem [shape: f32[1,128], index: 4, kind: input, shape index: {}]
  %s5 = inlined_call_operand.vmem [shape: f32[8,128], index: 5, kind: output, shape index: {}]
  %s6 = sld [smem:[#allocation0]]
  $region73: #{set2set_forward.1} parent=0
    _
  %s8 = ssub.s32 1, %s6
  %s9 = scalar_select 0, %s8, %s6
  $region1: #{set2set_forward.1} parent=0
    #allocation7 [shape = 'u8[32768]{0}', space=vmem, size = 0x8000, scoped, tag = 'input window, operand 2, single buffered']
    #allocation8 [shape = 's32[2]{0}', space=sflag, size = 0x8, scoped, tag = 'scoped memory for set2set_forward.1']
    %10 = vsyncpa [#allocation8], 0
    loop: start=0, step=1, limit=5
    $region2: #{set2set_forward.1} parent=1 // loop_pre_header
      _
    $region3: #{set2set_forward.1} parent=1 // loop_header
      %s12 = sphi 0, %s16
      %p13 = scmp.ge.s32.totalorder %s12, 5
      %s19 = sphi 0, %s31
      %s20 = sphi 0, %s27
      %s21 = sphi 0, %s19
      %s22 = sphi 0, %s20
      %s23 = sphi 0, %s21
      %s24 = sphi 0, %s22
      %s34 = sphi 0, %s36
      %s37 = sphi 0, %s34
      %s38 = sphi 0, %s37
      %s54 = sphi 0, %s38
      %s60 = sphi 0, %s62
      %s63 = sphi 0, %s60
      %s64 = sphi 0, %s63
      %s80 = sphi 0, %s64
      %s84 = sphi 0, %s84
      %s86 = sphi 0, %s84
      %s87 = sphi 0, %s86
      %s101 = sphi 0, %s87
      %s105 = sphi 0, %s105
      %s107 = sphi 0, %s105
      %s108 = sphi 0, %s107
      %s122 = sphi 0, %s108
      %s126 = sphi 0, %s126
      %s128 = sphi 0, %s126
      %s129 = sphi 0, %s128
      %s143 = sphi 0, %s129
      %s147 = sphi 0, %s147
      %s149 = sphi 0, %s147
      %s150 = sphi 0, %s149
      %s164 = sphi 0, %s150
    $region4: #{set2set_forward.1} parent=1 // loop_header_branch
      %15 = sbr.rel (%p13) target = $region8
    $region5: #{set2set_forward.1} parent=1 // loop_body
      %s17 = ssub.s32 %s12, 1
      %s18 = ssub.s32 %s12, 2
      %s25 = sadd.s32 1, %s20
      %p26 = scmp.ge.s32.totalorder %s25, 1
      %s27 = scalar_select %p26, 0, %s25
      %s28 = sadd.s32 1, %s19
      %s29 = scalar_select %p26, %s28, %s19
      %p30 = scmp.ge.s32.totalorder %s29, 3
      %s31 = scalar_select %p30, 0, %s29
      %s32 = ssub.s32 %s20, %s27
      %p33 = scmp.eq.s32.totalorder %s32, 0
      %s35 = sadd.s32 %s34, 1
      %s36 = scalar_select %p33, %s34, %s35
      %p39 = pneg %p33
      %p40 = scmp.eq.s32.totalorder %s12, 2
      %p41 = por %p39, %p40
      %p42 = scmp.ne.s32.totalorder %s34, %s37
      %p43 = scmp.eq.s32.totalorder %s12, 0
      %p44 = por %p42, %p43
      %p45 = scmp.ne.s32.totalorder %s34, %s37
      %p46 = scmp.eq.s32.totalorder %s17, 2
      %p47 = por %p45, %p46
      %p48 = scmp.ne.s32.totalorder %s37, %s38
      %p49 = scmp.eq.s32.totalorder %s17, 0
      %p50 = por %p48, %p49
      %p51 = scmp.ne.s32.totalorder %s37, %s38
      %p52 = scmp.eq.s32.totalorder %s18, 2
      %p53 = por %p51, %p52
      %p55 = scmp.ne.s32.totalorder %s38, %s54
      %p56 = scmp.eq.s32.totalorder %s18, 0
      %p57 = por %p55, %p56
      %s58 = ssub.s32 %s20, %s27
      %p59 = scmp.eq.s32.totalorder %s58, 0
      %s61 = sadd.s32 %s60, 1
      %s62 = scalar_select %p59, %s60, %s61
      %p65 = pneg %p59
      %p66 = scmp.eq.s32.totalorder %s12, 2
      %p67 = por %p65, %p66
      %p68 = scmp.ne.s32.totalorder %s60, %s63
      %p69 = scmp.eq.s32.totalorder %s12, 0
      %p70 = por %p68, %p69
      %p71 = scmp.ne.s32.totalorder %s60, %s63
      %p72 = scmp.eq.s32.totalorder %s17, 2
      %p73 = por %p71, %p72
      %p74 = scmp.ne.s32.totalorder %s63, %s64
      %p75 = scmp.eq.s32.totalorder %s17, 0
      %p76 = por %p74, %p75
      %p77 = scmp.ne.s32.totalorder %s63, %s64
      %p78 = scmp.eq.s32.totalorder %s18, 2
      %p79 = por %p77, %p78
      %p81 = scmp.ne.s32.totalorder %s64, %s80
      %p82 = scmp.eq.s32.totalorder %s18, 0
      %p83 = por %p81, %p82
      %s85 = sadd.s32 %s84, 1
      %p88 = scmp.eq.s32.totalorder %s12, 2
      %p89 = scmp.ne.s32.totalorder %s84, %s86
      %p90 = scmp.eq.s32.totalorder %s12, 0
      %p91 = por %p89, %p90
      %p92 = scmp.ne.s32.totalorder %s84, %s86
      %p93 = scmp.eq.s32.totalorder %s17, 2
      %p94 = por %p92, %p93
      %p95 = scmp.ne.s32.totalorder %s86, %s87
      %p96 = scmp.eq.s32.totalorder %s17, 0
      %p97 = por %p95, %p96
      %p98 = scmp.ne.s32.totalorder %s86, %s87
      %p99 = scmp.eq.s32.totalorder %s18, 2
      %p100 = por %p98, %p99
      %p102 = scmp.ne.s32.totalorder %s87, %s101
      %p103 = scmp.eq.s32.totalorder %s18, 0
      %p104 = por %p102, %p103
      %s106 = sadd.s32 %s105, 1
      %p109 = scmp.eq.s32.totalorder %s12, 2
      %p110 = scmp.ne.s32.totalorder %s105, %s107
      %p111 = scmp.eq.s32.totalorder %s12, 0
      %p112 = por %p110, %p111
      %p113 = scmp.ne.s32.totalorder %s105, %s107
      %p114 = scmp.eq.s32.totalorder %s17, 2
      %p115 = por %p113, %p114
      %p116 = scmp.ne.s32.totalorder %s107, %s108
      %p117 = scmp.eq.s32.totalorder %s17, 0
      %p118 = por %p116, %p117
      %p119 = scmp.ne.s32.totalorder %s107, %s108
      %p120 = scmp.eq.s32.totalorder %s18, 2
      %p121 = por %p119, %p120
      %p123 = scmp.ne.s32.totalorder %s108, %s122
      %p124 = scmp.eq.s32.totalorder %s18, 0
      %p125 = por %p123, %p124
      %s127 = sadd.s32 %s126, 1
      %p130 = scmp.eq.s32.totalorder %s12, 2
      %p131 = scmp.ne.s32.totalorder %s126, %s128
      %p132 = scmp.eq.s32.totalorder %s12, 0
      %p133 = por %p131, %p132
      %p134 = scmp.ne.s32.totalorder %s126, %s128
      %p135 = scmp.eq.s32.totalorder %s17, 2
      %p136 = por %p134, %p135
      %p137 = scmp.ne.s32.totalorder %s128, %s129
      %p138 = scmp.eq.s32.totalorder %s17, 0
      %p139 = por %p137, %p138
      %p140 = scmp.ne.s32.totalorder %s128, %s129
      %p141 = scmp.eq.s32.totalorder %s18, 2
      %p142 = por %p140, %p141
      %p144 = scmp.ne.s32.totalorder %s129, %s143
      %p145 = scmp.eq.s32.totalorder %s18, 0
      %p146 = por %p144, %p145
      %s148 = sadd.s32 %s147, 1
      %p151 = scmp.eq.s32.totalorder %s12, 2
      %p152 = scmp.ne.s32.totalorder %s147, %s149
      %p153 = scmp.eq.s32.totalorder %s12, 0
      %p154 = por %p152, %p153
      %p155 = scmp.ne.s32.totalorder %s147, %s149
      %p156 = scmp.eq.s32.totalorder %s17, 2
      %p157 = por %p155, %p156
      %p158 = scmp.ne.s32.totalorder %s149, %s150
      %p159 = scmp.eq.s32.totalorder %s17, 0
      %p160 = por %p158, %p159
      %p161 = scmp.ne.s32.totalorder %s149, %s150
      %p162 = scmp.eq.s32.totalorder %s18, 2
      %p163 = por %p161, %p162
      %p165 = scmp.ne.s32.totalorder %s150, %s164
      %p166 = scmp.eq.s32.totalorder %s18, 0
      %p167 = por %p165, %p166
      %p168 = scmp.le.s32.totalorder 1, %s12
      %p169 = scmp.lt.s32.totalorder %s12, 4
      %p170 = pnand %p168, %p169
      %p171 = pneg %p170
      // Predicated region
      $region9: #{set2set_forward.1} parent=5 // pred_check
        _
      $region10: #{set2set_forward.1} parent=5 // pred_check_branch
        %173 = sbr.rel (%p170) target = $region12
      $region11: #{set2set_forward.1} parent=5 // pred_region
        %s174 = ssub.s32 %s12, 1
        // Predicated region
        $region13: #{set2set_forward.1} parent=11 // pred_check
          %p175 = pneg %p50
        $region14: #{set2set_forward.1} parent=11 // pred_check_branch
          %177 = sbr.rel (%p175) target = $region16
        $region15: #{set2set_forward.1} parent=11 // pred_region
          %s178 = smul.u32 2, %s22
          %p179 = scmp.lt.s32.totalorder %s178, 1
          %s180 = scalar_select %p179, %s178, 1
          %s181 = smul.addr %s180, 4
          %s182 = scalar_lea.vmem %s0, %s181
          %s183 = smul.u32 2, %s22
        $region16: #{set2set_forward.1} parent=11 // pred_fallthru
          _
        // Predicated region
        $region17: #{set2set_forward.1} parent=11 // pred_check
          %p184 = pneg %p76
        $region18: #{set2set_forward.1} parent=11 // pred_check_branch
          %186 = sbr.rel (%p184) target = $region20
        $region19: #{set2set_forward.1} parent=11 // pred_region
          %p187 = scmp.lt.s32.totalorder %s22, 0
          %s188 = scalar_select %p187, %s22, 0
          %s189 = scalar_lea.vmem %s1, %s188
        $region20: #{set2set_forward.1} parent=11 // pred_fallthru
          _
        // Predicated region
        $region21: #{set2set_forward.1} parent=11 // pred_check
          %p190 = pneg %p97
        $region22: #{set2set_forward.1} parent=11 // pred_check_branch
          %192 = sbr.rel (%p190) target = $region24
        $region23: #{set2set_forward.1} parent=11 // pred_region
          %s194 = ssub.s32 1024, 1024
          %195 = vsyncadd [#allocation8], %s194
          %s196 = sshll.u32 [#allocation7], 4
          %s197 = int_to_ptr.vmem [resolvable:$true] %s196
          %202 = dma.hbm_to_vmem [thread:$0]  %s2, 1024, %s197, [#allocation8], 128, 128, 8
        $region24: #{set2set_forward.1} parent=11 // pred_fallthru
          _
        // Predicated region
        $region25: #{set2set_forward.1} parent=11 // pred_check
          %p203 = pneg %p118
        $region26: #{set2set_forward.1} parent=11 // pred_check_branch
          %205 = sbr.rel (%p203) target = $region28
        $region27: #{set2set_forward.1} parent=11 // pred_region
          _
        $region28: #{set2set_forward.1} parent=11 // pred_fallthru
          _
        // Predicated region
        $region29: #{set2set_forward.1} parent=11 // pred_check
          %p206 = pneg %p139
        $region30: #{set2set_forward.1} parent=11 // pred_check_branch
          %208 = sbr.rel (%p206) target = $region32
        $region31: #{set2set_forward.1} parent=11 // pred_region
          _
        $region32: #{set2set_forward.1} parent=11 // pred_fallthru
          _
      $region12: #{set2set_forward.1} parent=5 // pred_fallthru
        _
      %p209 = scmp.lt.s32.totalorder %s12, 3
      // Predicated region
      $region33: #{set2set_forward.1} parent=5 // pred_check
        %p210 = pneg %p209
      $region34: #{set2set_forward.1} parent=5 // pred_check_branch
        %212 = sbr.rel (%p210) target = $region36
      $region35: #{set2set_forward.1} parent=5 // pred_region
        _
      $region36: #{set2set_forward.1} parent=5 // pred_fallthru
        _
      %p213 = scmp.le.s32.totalorder 1, %s12
      %p214 = scmp.lt.s32.totalorder %s12, 4
      %p215 = pnand %p213, %p214
      %p216 = pneg %p215
      // Predicated region
      $region37: #{set2set_forward.1} parent=5 // pred_check
        _
      $region38: #{set2set_forward.1} parent=5 // pred_check_branch
        %218 = sbr.rel (%p215) target = $region40
      $region39: #{set2set_forward.1} parent=5 // pred_region
        %s219 = ssub.s32 %s12, 1
        // Predicated region
        $region41: #{set2set_forward.1} parent=39 // pred_check
          %p220 = pneg %p97
        $region42: #{set2set_forward.1} parent=39 // pred_check_branch
          %222 = sbr.rel (%p220) target = $region44
        $region43: #{set2set_forward.1} parent=39 // pred_region
          %223 = dma.done [#allocation8], 1024
        $region44: #{set2set_forward.1} parent=39 // pred_fallthru
          _
        %s224 = smul.u32 2, %s22
        %p225 = scmp.lt.s32.totalorder %s224, 1
        %s226 = scalar_select %p225, %s224, 1
        %s227 = smul.addr %s226, 4
        %s228 = scalar_lea.vmem %s0, %s227
        %p229 = pneg %p50
        %p230 = pneg %p47
        %p231 = scmp.lt.s32.totalorder %s22, 0
        %s232 = scalar_select %p231, %s22, 0
        %s233 = scalar_lea.vmem %s1, %s232
        %p234 = pneg %p76
        %p235 = pneg %p73
        %p236 = pneg %p97
        %p237 = pneg %p94
        %p238 = pneg %p118
        %p239 = pneg %p115
        %p240 = pneg %p139
        %p241 = pneg %p136
        %p242 = pneg %p160
        %p243 = pneg %p157
        %s244 = smul.u32 2, %s22
        %p245 = scmp.lt.s32.totalorder %s244, 1
        %s246 = scalar_select %p245, %s244, 1
        %s247 = smul.addr %s246, 4
        %s248 = scalar_lea.vmem %s0, %s247
        %s249 = smul.u32 2, %s22
        %p250 = scmp.lt.s32.totalorder %s22, 0
        %s251 = scalar_select %p250, %s22, 0
        %s252 = scalar_lea.vmem %s1, %s251
        %p254 = scmp.eq.s32.totalorder %s21, 0
        %p255 = scmp.eq.s32.totalorder %s22, 0
        %p256 = pnand %p254, %p255
        %p257 = pneg %p256
        // Predicated region
        $region45: #{set2set_forward.1} parent=39 // pred_check
          _
        $region46: #{set2set_forward.1} parent=39 // pred_check_branch
          %259 = sbr.rel (%p256) target = $region48
        $region47: #{set2set_forward.1} parent=39 // pred_region
          %vm260 = vcmask 261120
          %261 = vst.msk [vmem:[#allocation2] sm:$0xff] %vm260, 0.0
          %262 = vst.msk [vmem:[#allocation3] sm:$0xff] %vm260, 0.0
          %263 = vst.msk [vmem:[#allocation6] sm:$0xff] %vm260, 0.0
          %264 = vst [vmem:[%s5] sm:$0xff] 0.0
        $region48: #{set2set_forward.1} parent=39 // pred_fallthru
          _
        // Predicated region
        $region49: #{set2set_forward.1} parent=39 // pred_check
          %p265 = pneg %p255
        $region50: #{set2set_forward.1} parent=39 // pred_check_branch
          %267 = sbr.rel (%p265) target = $region52
        $region51: #{set2set_forward.1} parent=39 // pred_region
          %v268 = vld [vmem:[#allocation2] sm:$0xff]
          %v269 = vld [vmem:[#allocation6] sm:$0xff]
          %271 = vrot.lane.b32.xlu0 %v269, 32
          %v272 = vpop.permute.xlu0 %271
          %vm274 = vcmask 261120
          %v275 = vsel %vm274, %v268, %v272
          %v276 = vld [vmem:[#allocation7] sm:$0xff]
          %v277 = vld [vmem:[#allocation7 + $0x8] sm:$0xff]
          %v278 = vld [vmem:[#allocation7 + $0x10] sm:$0xff]
          %v279 = vld [vmem:[#allocation7 + $0x18] sm:$0xff]
          %v280 = vld [vmem:[#allocation7 + $0x20] sm:$0xff]
          %v281 = vld [vmem:[#allocation7 + $0x28] sm:$0xff]
          %v282 = vld [vmem:[#allocation7 + $0x30] sm:$0xff]
          %v283 = vld [vmem:[#allocation7 + $0x38] sm:$0xff]
          %v284 = vld [vmem:[%s3] sm:$0xff]
          %v285 = vld [vmem:[%s3 + $0x8] sm:$0xff]
          %v286 = vld [vmem:[%s3 + $0x10] sm:$0xff]
          %v287 = vld [vmem:[%s3 + $0x18] sm:$0xff]
          %v289 = vsel %vm274, %v268, 0
          %291 = vmatprep.subr.mxu0 0.0
          %292 = vmatpush1.msra.mxu0 0.0
          %293 = vmatprep.subr.mxu0 0.0
          %294 = vmatpush1.msra.mxu0 0.0
          %295 = vmatprep.subr.mxu0 0.0
          %296 = vmatpush1.msra.mxu0 0.0
          %297 = vmatprep.subr.mxu0 0.0
          %298 = vmatpush1.msra.mxu0 0.0
          %299 = vmatprep.subr.mxu0 0.0
          %300 = vmatpush1.msra.mxu0 0.0
          %301 = vmatprep.subr.mxu0 0.0
          %302 = vmatpush1.msra.mxu0 0.0
          %303 = vmatprep.subr.mxu0 0.0
          %304 = vmatpush1.msra.mxu0 0.0
          %305 = vmatprep.subr.mxu0 0.0
          %306 = vmatpush1.msra.mxu0 0.0
          %307 = vmatprep.subr.mxu0 0.0
          %308 = vmatpush1.msra.mxu0 0.0
          %309 = vmatprep.subr.mxu0 0.0
          %310 = vmatpush1.msra.mxu0 0.0
          %311 = vmatprep.subr.mxu0 0.0
          %312 = vmatpush1.msra.mxu0 0.0
          %313 = vmatprep.subr.mxu0 0.0
          %314 = vmatpush1.msra.mxu0 0.0
          %315 = vmatprep.subr.mxu0 0.0
          %316 = vmatpush1.msra.mxu0 %v287
          %317 = vmatprep.subr.mxu0 0.0
          %318 = vmatpush1.msra.mxu0 %v286
          %319 = vmatprep.subr.mxu0 0.0
          %320 = vmatpush1.msra.mxu0 %v285
          %321 = vmatprep.subr.mxu0 0.0
          %322 = vmatpush1.msra.mxu0 %v284
          %323 = vmatprep.subr.mxu0 0.0
          %324 = vmatpush2.msra.mxu0 0.0
          %325 = vmatprep.subr.mxu0 0.0
          %326 = vmatpush2.msra.mxu0 0.0
          %327 = vmatprep.subr.mxu0 0.0
          %328 = vmatpush2.msra.mxu0 0.0
          %329 = vmatprep.subr.mxu0 0.0
          %330 = vmatpush2.msra.mxu0 0.0
          %331 = vmatprep.subr.mxu0 0.0
          %332 = vmatpush2.msra.mxu0 0.0
          %333 = vmatprep.subr.mxu0 0.0
          %334 = vmatpush2.msra.mxu0 0.0
          %335 = vmatprep.subr.mxu0 0.0
          %336 = vmatpush2.msra.mxu0 0.0
          %337 = vmatprep.subr.mxu0 0.0
          %338 = vmatpush2.msra.mxu0 0.0
          %339 = vmatprep.subr.mxu0 0.0
          %340 = vmatpush2.msra.mxu0 0.0
          %341 = vmatprep.subr.mxu0 0.0
          %342 = vmatpush2.msra.mxu0 0.0
          %343 = vmatprep.subr.mxu0 0.0
          %344 = vmatpush2.msra.mxu0 0.0
          %345 = vmatprep.subr.mxu0 0.0
          %346 = vmatpush2.msra.mxu0 0.0
          %347 = vmatprep.subr.mxu0 0.0
          %348 = vmatpush2.msra.mxu0 0.0
          %349 = vmatprep.subr.mxu0 0.0
          %350 = vmatpush2.msra.mxu0 0.0
          %351 = vmatprep.subr.mxu0 0.0
          %352 = vmatpush2.msra.mxu0 0.0
          %353 = vmatprep.subr.mxu0 0.0
          %354 = vmatpush2.msra.mxu0 0.0
          %355 = vmatprep.mubr.f32.mxu0 0.0
          %356 = vmatmul.mubr.f32.gmra.mxu0 %v289
          %v357 = vpop.f32.mrf.mxu0
          %v358 = vadd.f32 0.0, %v357
          %v359 = vpop.f32.mrf.mxu0
          %360 = vdwg.mxu0
          %vm361 = vcmask 523264
          %v363 = vsel %vm361, %v275, 0
          %365 = vmatprep.subr.mxu0 0.0
          %366 = vmatpush1.msra.mxu0 0.0
          %367 = vmatprep.subr.mxu0 0.0
          %368 = vmatpush1.msra.mxu0 0.0
          %369 = vmatprep.subr.mxu0 0.0
          %370 = vmatpush1.msra.mxu0 0.0
          %371 = vmatprep.subr.mxu0 0.0
          %372 = vmatpush1.msra.mxu0 0.0
          %373 = vmatprep.subr.mxu0 0.0
          %374 = vmatpush1.msra.mxu0 0.0
          %375 = vmatprep.subr.mxu0 0.0
          %376 = vmatpush1.msra.mxu0 0.0
          %377 = vmatprep.subr.mxu0 0.0
          %378 = vmatpush1.msra.mxu0 0.0
          %379 = vmatprep.subr.mxu0 0.0
          %380 = vmatpush1.msra.mxu0 0.0
          %381 = vmatprep.subr.mxu0 0.0
          %382 = vmatpush1.msra.mxu0 %v283
          %383 = vmatprep.subr.mxu0 0.0
          %384 = vmatpush1.msra.mxu0 %v282
          %385 = vmatprep.subr.mxu0 0.0
          %386 = vmatpush1.msra.mxu0 %v281
          %387 = vmatprep.subr.mxu0 0.0
          %388 = vmatpush1.msra.mxu0 %v280
          %389 = vmatprep.subr.mxu0 0.0
          %390 = vmatpush1.msra.mxu0 %v279
          %391 = vmatprep.subr.mxu0 0.0
          %392 = vmatpush1.msra.mxu0 %v278
          %393 = vmatprep.subr.mxu0 0.0
          %394 = vmatpush1.msra.mxu0 %v277
          %395 = vmatprep.subr.mxu0 0.0
          %396 = vmatpush1.msra.mxu0 %v276
          %397 = vmatprep.subr.mxu0 0.0
          %398 = vmatpush2.msra.mxu0 0.0
          %399 = vmatprep.subr.mxu0 0.0
          %400 = vmatpush2.msra.mxu0 0.0
          %401 = vmatprep.subr.mxu0 0.0
          %402 = vmatpush2.msra.mxu0 0.0
          %403 = vmatprep.subr.mxu0 0.0
          %404 = vmatpush2.msra.mxu0 0.0
          %405 = vmatprep.subr.mxu0 0.0
          %406 = vmatpush2.msra.mxu0 0.0
          %407 = vmatprep.subr.mxu0 0.0
          %408 = vmatpush2.msra.mxu0 0.0
          %409 = vmatprep.subr.mxu0 0.0
          %410 = vmatpush2.msra.mxu0 0.0
          %411 = vmatprep.subr.mxu0 0.0
          %412 = vmatpush2.msra.mxu0 0.0
          %413 = vmatprep.subr.mxu0 0.0
          %414 = vmatpush2.msra.mxu0 0.0
          %415 = vmatprep.subr.mxu0 0.0
          %416 = vmatpush2.msra.mxu0 0.0
          %417 = vmatprep.subr.mxu0 0.0
          %418 = vmatpush2.msra.mxu0 0.0
          %419 = vmatprep.subr.mxu0 0.0
          %420 = vmatpush2.msra.mxu0 0.0
          %421 = vmatprep.subr.mxu0 0.0
          %422 = vmatpush2.msra.mxu0 0.0
          %423 = vmatprep.subr.mxu0 0.0
          %424 = vmatpush2.msra.mxu0 0.0
          %425 = vmatprep.subr.mxu0 0.0
          %426 = vmatpush2.msra.mxu0 0.0
          %427 = vmatprep.subr.mxu0 0.0
          %428 = vmatpush2.msra.mxu0 0.0
          %429 = vmatprep.mubr.f32.mxu0 0.0
          %430 = vmatmul.mubr.f32.gmra.mxu0 %v363
          %v431 = vpop.f32.mrf.mxu0
          %v432 = vadd.f32 %v358, %v431
          %v433 = vpop.f32.mrf.mxu0
          %434 = vdwg.mxu0
          %v435 = vld [vmem:[%s4] sm:$0x1]
          %v437 = vlaneseq
          %v438 = vshrl.u32 %v437, 7
          %v439 = vsub.s32 0, %v438
          %v440 = vrot.slane %v435, %v439
          %v442 = vadd.f32 %v432, %v440
          %v443 = vxor.u32 %v442, 2147483648
          %v444 = vmul.f32 %v443, 1.442695
          %v445 = vpow.pop %v444
          %v446 = vadd.f32 %v445, 1.0
          %v447 = vrcp.pop %v446
          %v448 = vmul.f32 1.0, %v447
          %v449 = vtanh.pop %v442
          %v450 = vld [vmem:[#allocation3] sm:$0xff]
          %452 = vrot.lane.b32.xlu0 %v450, 32
          %v453 = vpop.permute.xlu0 %452
          %v455 = vmul.f32 %v448, %v453
          %457 = vrot.lane.b32.xlu0 %v449, 64
          %v458 = vpop.permute.xlu0 %457
          %v460 = vmul.f32 %v448, %v458
          %462 = vrot.lane.b32.xlu0 %v460, 32
          %v463 = vpop.permute.xlu0 %462
          %v465 = vadd.f32 %v455, %v463
          %v466 = vtanh.pop %v465
          %468 = vrot.lane.b32.xlu0 %v466, 64
          %v469 = vpop.permute.xlu0 %468
          %v471 = vmul.f32 %v448, %v469
          %473 = vrot.lane.b32.xlu0 %v465, 96
          %v474 = vpop.permute.xlu0 %473
          %476 = vst.msk [vmem:[#allocation3] sm:$0xff] %vm274, %v474
          %478 = vrot.lane.b32.xlu0 %v471, 32
          %v479 = vpop.permute.xlu0 %478
          %481 = vst.msk [vmem:[#allocation2] sm:$0xff] %vm274, %v479
          %vm482 = vcmask 7168
          %483 = vst.msk [vmem:[#allocation4] sm:$0xff] %vm482, -1e+30
          %484 = vst.msk [vmem:[#allocation5] sm:$0xff] %vm482, 0.0
          %485 = vst.msk [vmem:[#allocation6] sm:$0xff] %vm274, 0.0
        $region52: #{set2set_forward.1} parent=39 // pred_fallthru
          _
        %v486 = vld [vmem:[%s248] sm:$0xf]
        %v487 = vld [vmem:[%s248 + $0x4] sm:$0xf]
        %v488 = vld [vmem:[%s252] sm:$0x1]
        %v489 = vld [vmem:[#allocation2] sm:$0xff]
        %v490 = vpack.c.bf16 %v489, %v489
        %v493 = vunpack.c.l.b16 %v486
        %v494 = vunpack.c.l.b16 %v487
        %v495 = vpack.c.b16 %v494, %v493
        %vm496 = vcmask 261120
        %v498 = vsel %vm496, %v490, 0
        %v501 = vsel %vm496, %v495, 0
        %503 = vmatprep.subr.bf16.mxu0 0
        %504 = vmatpush1.bf16.xpose.msra.mxu0 0
        %505 = vmatprep.subr.bf16.mxu0 0
        %506 = vmatpush1.bf16.xpose.msra.mxu0 0
        %507 = vmatprep.subr.bf16.mxu0 0
        %508 = vmatpush1.bf16.xpose.msra.mxu0 0
        %509 = vmatprep.subr.bf16.mxu0 0
        %510 = vmatpush1.bf16.xpose.msra.mxu0 0
        %511 = vmatprep.subr.bf16.mxu0 0
        %512 = vmatpush1.bf16.xpose.msra.mxu0 0
        %513 = vmatprep.subr.bf16.mxu0 0
        %514 = vmatpush1.bf16.xpose.msra.mxu0 0
        %515 = vmatprep.subr.bf16.mxu0 0
        %516 = vmatpush1.bf16.xpose.msra.mxu0 0
        %517 = vmatprep.subr.bf16.mxu0 0
        %518 = vmatpush1.bf16.xpose.msra.mxu0 %v501
        %519 = vmatprep.subr.bf16.mxu0 0
        %520 = vmatpush2.bf16.xpose.msra.mxu0 0
        %521 = vmatprep.subr.bf16.mxu0 0
        %522 = vmatpush2.bf16.xpose.msra.mxu0 0
        %523 = vmatprep.subr.bf16.mxu0 0
        %524 = vmatpush2.bf16.xpose.msra.mxu0 0
        %525 = vmatprep.subr.bf16.mxu0 0
        %526 = vmatpush2.bf16.xpose.msra.mxu0 0
        %527 = vmatprep.subr.bf16.mxu0 0
        %528 = vmatpush2.bf16.xpose.msra.mxu0 0
        %529 = vmatprep.subr.bf16.mxu0 0
        %530 = vmatpush2.bf16.xpose.msra.mxu0 0
        %531 = vmatprep.subr.bf16.mxu0 0
        %532 = vmatpush2.bf16.xpose.msra.mxu0 0
        %533 = vmatprep.subr.bf16.mxu0 0
        %534 = vmatpush2.bf16.xpose.msra.mxu0 0
        %535 = vmatprep.mubr.bf16.mxu0 0
        %536 = vmatmul.mubr.bf16.gmra.mxu0 %v498
        %v537 = vpop.f32.mrf.mxu0
        %v538 = vadd.f32 0.0, %v537
        %v539 = vpop.f32.mrf.mxu0
        %v540 = vpop.f32.mrf.mxu0
        %v541 = vpop.f32.mrf.mxu0
        %542 = vdwg.mxu0
        %v543 = vlaneseq
        %v544 = vshrl.u32 %v543, 7
        %v545 = vlaneseq
        %v546 = vshrl.u32 %v545, 7
        %v547 = vsub.s32 0, %v546
        %v548 = vrot.slane %v488, %v547
        %vm549 = vcmp.eq.s32.totalorder %v544, %v548
        %v550 = vsel %vm549, %v538, -1e+30
        %vm551 = vcmask 130048
        %v552 = vsel %vm551, %v550, -inf
        %553 = vmax.xlane.f32.xlu0 %v552
        %v554 = vpop.xlane.xlu0 %553
        %v555 = vld [vmem:[#allocation4] sm:$0xff]
        %v556 = vmax.f32 %v555, %v554
        %v557 = vsub.f32 %v555, %v556
        %v558 = vmul.f32 %v557, 1.442695
        %v559 = vpow.pop %v558
        %561 = vset.pattern.permute.xlu0 0
        %562 = vperm.xlu0 %561, %v556
        %v563 = vpop.permute.xlu0 %562
        %v565 = vsub.f32 %v538, %v563
        %v566 = vmul.f32 %v565, 1.442695
        %v567 = vpow.pop %v566
        %v568 = vsel %vm549, %v567, 0.0
        %v569 = vld [vmem:[#allocation5] sm:$0xff]
        %v570 = vmul.f32 %v559, %v569
        %v571 = vsel %vm551, %v568, 0.0
        %572 = vadd.xlane.f32.xlu0 %v571
        %v573 = vpop.xlane.xlu0 %572
        %v574 = vadd.f32 %v570, %v573
        %vm575 = vcmask 7168
        %576 = vst.msk [vmem:[#allocation5] sm:$0xff] %vm575, %v574
        %v577 = vld [vmem:[#allocation6] sm:$0xff]
        %579 = vset.pattern.permute.xlu0 0
        %580 = vperm.xlu0 %579, %v559
        %v581 = vpop.permute.xlu0 %580
        %v583 = vmul.f32 %v581, %v577
        %v584 = vpack.c.bf16 %v568, %v568
        %v587 = vsel %vm551, %v584, 0
        %589 = vmatprep.subr.bf16.mxu0 0
        %590 = vmatpush1.bf16.msra.mxu0 0
        %591 = vmatprep.subr.bf16.mxu0 0
        %592 = vmatpush1.bf16.msra.mxu0 0
        %593 = vmatprep.subr.bf16.mxu0 0
        %594 = vmatpush1.bf16.msra.mxu0 0
        %595 = vmatprep.subr.bf16.mxu0 0
        %596 = vmatpush1.bf16.msra.mxu0 0
        %597 = vmatprep.subr.bf16.mxu0 0
        %598 = vmatpush1.bf16.msra.mxu0 0
        %599 = vmatprep.subr.bf16.mxu0 0
        %600 = vmatpush1.bf16.msra.mxu0 0
        %601 = vmatprep.subr.bf16.mxu0 0
        %602 = vmatpush1.bf16.msra.mxu0 0
        %603 = vmatprep.subr.bf16.mxu0 0
        %604 = vmatpush1.bf16.msra.mxu0 %v495
        %605 = vmatprep.subr.bf16.mxu0 0
        %606 = vmatpush2.bf16.msra.mxu0 0
        %607 = vmatprep.subr.bf16.mxu0 0
        %608 = vmatpush2.bf16.msra.mxu0 0
        %609 = vmatprep.subr.bf16.mxu0 0
        %610 = vmatpush2.bf16.msra.mxu0 0
        %611 = vmatprep.subr.bf16.mxu0 0
        %612 = vmatpush2.bf16.msra.mxu0 0
        %613 = vmatprep.subr.bf16.mxu0 0
        %614 = vmatpush2.bf16.msra.mxu0 0
        %615 = vmatprep.subr.bf16.mxu0 0
        %616 = vmatpush2.bf16.msra.mxu0 0
        %617 = vmatprep.subr.bf16.mxu0 0
        %618 = vmatpush2.bf16.msra.mxu0 0
        %619 = vmatprep.subr.bf16.mxu0 0
        %620 = vmatpush2.bf16.msra.mxu0 0
        %621 = vmatprep.mubr.bf16.mxu0 0
        %622 = vmatmul.mubr.bf16.gmra.mxu0 %v587
        %v623 = vpop.f32.mrf.mxu0
        %v624 = vadd.f32 0.0, %v623
        %v625 = vpop.f32.mrf.mxu0
        %v626 = vpop.f32.mrf.mxu0
        %v627 = vpop.f32.mrf.mxu0
        %628 = vdwg.mxu0
        %v629 = vadd.f32 %v583, %v624
        %630 = vst.msk [vmem:[#allocation6] sm:$0xff] %vm496, %v629
        %631 = vst.msk [vmem:[#allocation4] sm:$0xff] %vm575, %v556
        // Predicated region
        $region53: #{set2set_forward.1} parent=39 // pred_check
          %p632 = pneg %p255
        $region54: #{set2set_forward.1} parent=39 // pred_check_branch
          %634 = sbr.rel (%p632) target = $region56
        $region55: #{set2set_forward.1} parent=39 // pred_region
          %v635 = vld [vmem:[#allocation5] sm:$0xff]
          %v636 = vmax.f32 %v635, 1e-30
          %v637 = vld [vmem:[#allocation6] sm:$0xff]
          %v638 = vrcp.pop %v636
          %640 = vset.pattern.permute.xlu0 0
          %641 = vperm.xlu0 %640, %v638
          %v642 = vpop.permute.xlu0 %641
          %v644 = vmul.f32 %v637, %v642
          %645 = vst.msk [vmem:[#allocation6] sm:$0xff] %vm496, %v644
        $region56: #{set2set_forward.1} parent=39 // pred_fallthru
          _
        %p646 = scmp.eq.s32.totalorder %s21, 2
        %p647 = pnand %p255, %p646
        %p648 = pneg %p647
        // Predicated region
        $region57: #{set2set_forward.1} parent=39 // pred_check
          _
        $region58: #{set2set_forward.1} parent=39 // pred_check_branch
          %650 = sbr.rel (%p647) target = $region60
        $region59: #{set2set_forward.1} parent=39 // pred_region
          %v651 = vld [vmem:[#allocation2] sm:$0xff]
          %v652 = vld [vmem:[#allocation6] sm:$0xff]
          %654 = vrot.lane.b32.xlu0 %v652, 32
          %v655 = vpop.permute.xlu0 %654
          %v657 = vsel %vm496, %v651, %v655
          %vm658 = vcmask 523264
          %v659 = vsel %vm658, %v657, 0.0
          %660 = vst [vmem:[%s5] sm:$0xff] %v659
        $region60: #{set2set_forward.1} parent=39 // pred_fallthru
          _
        // Predicated region
        $region61: #{set2set_forward.1} parent=39 // pred_check
          %p661 = pneg %p157
        $region62: #{set2set_forward.1} parent=39 // pred_check_branch
          %663 = sbr.rel (%p661) target = $region64
        $region63: #{set2set_forward.1} parent=39 // pred_region
          _
        $region64: #{set2set_forward.1} parent=39 // pred_fallthru
          _
        // Predicated region
        $region65: #{set2set_forward.1} parent=39 // pred_check
          %p664 = pneg %p157
        $region66: #{set2set_forward.1} parent=39 // pred_check_branch
          %666 = sbr.rel (%p664) target = $region68
        $region67: #{set2set_forward.1} parent=39 // pred_region
          _
        $region68: #{set2set_forward.1} parent=39 // pred_fallthru
          _
      $region40: #{set2set_forward.1} parent=5 // pred_fallthru
        _
      %p667 = scmp.le.s32.totalorder 2, %s12
      // Predicated region
      $region69: #{set2set_forward.1} parent=5 // pred_check
        %p668 = pneg %p667
      $region70: #{set2set_forward.1} parent=5 // pred_check_branch
        %670 = sbr.rel (%p668) target = $region72
      $region71: #{set2set_forward.1} parent=5 // pred_region
        %s671 = ssub.s32 %s12, 2
      $region72: #{set2set_forward.1} parent=5 // pred_fallthru
        _
    $region6: #{set2set_forward.1} parent=1 // loop_footer
      %s16 = sadd.s32 1, %s12
    $region7: #{set2set_forward.1} parent=1 // loop_footer_branch
      %11 = sbr.rel target = $region3
    $region8: #{set2set_forward.1} parent=1 // loop_exit
      _
    %672 = vsyncpa [#allocation8], 1
    %s673 = scalar_lea.sflag [#allocation8], 1
    %674 = vsyncpa %s673, 1

</llo_original>
